<compile_context>
chip_gen: v5e
topology: v5e:2x2
jax: 0.10.0
libtpu: 0.0.40
codegen_flags: <defaults>
</compile_context>

<pallas_src>
import functools

import jax
import jax.numpy as jnp
from jax.experimental import pallas as pl
from jax.experimental.pallas import tpu as pltpu


# ---------------------------------------------------------------------------
# Kernel
# ---------------------------------------------------------------------------
def mlp_kernel(x_ref, w1_ref, b1_ref, w2_ref, b2_ref, w3_ref, b3_ref, o_ref):
    # x tile: (TB, 1024); weights padded to 128-wide hidden dims.
    x = x_ref[...]

    # fc1 + ReLU   -> (TB, 128)   (lanes 120..127 are exactly 0)
    h1 = jnp.dot(x, w1_ref[...], preferred_element_type=jnp.float32) + b1_ref[...]
    h1 = jnp.maximum(h1, 0.0)

    # fc2 + ReLU   -> (TB, 128)   (lanes 84..127 are exactly 0)
    h2 = jnp.dot(h1, w2_ref[...], preferred_element_type=jnp.float32) + b2_ref[...]
    h2 = jnp.maximum(h2, 0.0)

    # tanh
    h2 = jnp.tanh(h2)

    # fc3          -> (TB, 10)    (padded K rows of W3 are 0 -> no contribution)
    logits = jnp.dot(h2, w3_ref[...], preferred_element_type=jnp.float32) + b3_ref[...]

    # softmax over the class axis; divide on the EUP via approximate reciprocal.
    m = jnp.max(logits, axis=-1, keepdims=True)
    e = jnp.exp(logits - m)
    s = jnp.sum(e, axis=-1, keepdims=True)
    o_ref[...] = e * pl.reciprocal(s, approx=True)


# ---------------------------------------------------------------------------
# Wrapper
# ---------------------------------------------------------------------------
def _round_up(n, m):
    return ((n + m - 1) // m) * m


def _pad_to(a, shape):
    pads = [(0, t - s) for s, t in zip(a.shape, shape)]
    return jnp.pad(a, pads)


def net_cifar_msa_forward(x_nchw, params, *, block_b=1024, use_bf16=False):
    """Forward pass matching NetCIFARMSA.forward.

    x_nchw: (B, C, H, W) with C*H*W a multiple of 1024 (here 1*32*32); the
    flatten mirrors torch's x.view(-1, 32*32).
    block_b: batch-tile size (rounded to a multiple of 8). 512-1024 keeps the
    double-buffered x tiles well under VMEM limits on v5e/v6e/v7x.
    use_bf16: cast x and W1 to bf16 for the fc1 matmul (f32 accumulation) to
    halve the dominant HBM stream on v6e/v7x.
    """
    w1, b1, w2, b2, w3, b3 = params

    # Flatten exactly like torch's view(-1, 32*32).
    x2d = x_nchw.reshape(-1, 32 * 32).astype(jnp.float32)
    batch = x2d.shape[0]

    # Zero-pad hidden feature dims 120 -> 128 and 84 -> 128 (numerically exact).
    w1p = _pad_to(w1.astype(jnp.float32), (1024, 128))
    b1p = _pad_to(b1.astype(jnp.float32), (1, 128))
    w2p = _pad_to(w2.astype(jnp.float32), (128, 128))
    b2p = _pad_to(b2.astype(jnp.float32), (1, 128))
    w3p = _pad_to(w3.astype(jnp.float32), (128, 10))
    b3p = b3.astype(jnp.float32).reshape(1, 10)

    if use_bf16:
        x2d = x2d.astype(jnp.bfloat16)
        w1p = w1p.astype(jnp.bfloat16)

    # Batch tile: multiple of 8, no larger than the (padded) batch.
    tb = block_b if batch >= block_b else _round_up(batch, 8)
    tb = max(8, _round_up(tb, 8))
    padded_batch = _round_up(batch, tb)
    if padded_batch != batch:
        x2d = jnp.pad(x2d, ((0, padded_batch - batch), (0, 0)))
    grid = (padded_batch // tb,)

    # Resident operands: constant block index across the batch grid.
    resident = lambda shape: pl.BlockSpec(shape, lambda i: (0, 0))

    out = pl.pallas_call(
        mlp_kernel,
        out_shape=jax.ShapeDtypeStruct((padded_batch, 10), jnp.float32),
        grid=grid,
        in_specs=[
            pl.BlockSpec((tb, 1024), lambda i: (i, 0)),   # x: streamed per tile
            resident((1024, 128)),                        # W1 (padded)
            resident((1, 128)),                           # b1
            resident((128, 128)),                         # W2 (padded)
            resident((1, 128)),                           # b2
            resident((128, 10)),                          # W3 (padded)
            resident((1, 10)),                            # b3
        ],
        out_specs=pl.BlockSpec((tb, 10), lambda i: (i, 0)),
        compiler_params=pltpu.CompilerParams(
            dimension_semantics=("parallel",),            # megacore on v7x
            vmem_limit_bytes=48 * 1024 * 1024,            # fits v7x's 64 MiB VMEM
        ),
    )(x2d, w1p, b1p, w2p, b2p, w3p, b3p)

    return out[:batch]


# ---------------------------------------------------------------------------
# Params & reference
# ---------------------------------------------------------------------------
def init_params(key):
    """Deterministic init with PyTorch nn.Linear-style uniform(+-1/sqrt(fan_in))."""
    ks = jax.random.split(key, 6)

    def linear(kw, kb, fan_in, fan_out):
        bound = 1.0 / jnp.sqrt(jnp.float32(fan_in))
        # stored as (in, out) so the kernel does x @ W
        w = jax.random.uniform(kw, (fan_in, fan_out), jnp.float32, -bound, bound)
        b = jax.random.uniform(kb, (1, fan_out), jnp.float32, -bound, bound)
        return w, b

    w1, b1 = linear(ks[0], ks[1], 32 * 32, 120)
    w2, b2 = linear(ks[2], ks[3], 120, 84)
    w3, b3 = linear(ks[4], ks[5], 84, 10)
    return (w1, b1, w2, b2, w3, b3)


def reference_forward(x_nchw, params):
    """Plain-JAX reference identical to the PyTorch module."""
    w1, b1, w2, b2, w3, b3 = params
    x = x_nchw.reshape(-1, 32 * 32).astype(jnp.float32)
    x = jax.nn.relu(x @ w1 + b1)
    x = jax.nn.relu(x @ w2 + b2)
    x = jnp.tanh(x)
    x = x @ w3 + b3
    return jax.nn.softmax(x, axis=1)


# ---------------------------------------------------------------------------
# Self-test
# ---------------------------------------------------------------------------
if __name__ == "__main__":
    key = jax.random.PRNGKey(0)
    kx, kx2, kp = jax.random.split(key, 3)
    params = init_params(kp)

    # Small input consistent with view(-1, 32*32): NCHW, single 32x32 channel.
    x = jax.random.normal(kx, (2, 1, 32, 32), jnp.float32)
    ref = reference_forward(x, params)

    # f32 path (single grid step; batch padded 2 -> 8, sliced back).
    out = jax.block_until_ready(net_cifar_msa_forward(x, params))
    assert out.shape == (2, 10), out.shape
    assert jnp.allclose(jnp.sum(out, axis=1), 1.0, atol=5e-3)
    # approx reciprocal in the softmax => slightly looser than exact f32.
    assert jnp.allclose(out, ref, atol=2e-3, rtol=2e-2), jnp.max(jnp.abs(out - ref))

    # Multi-step grid path: batch 24 with an 8-row tile -> grid=(3,).
    x_big = jax.random.normal(kx2, (24, 1, 32, 32), jnp.float32)
    ref_big = reference_forward(x_big, params)
    out_big = jax.block_until_ready(
        net_cifar_msa_forward(x_big, params, block_b=8)
    )
    assert out_big.shape == (24, 10)
    assert jnp.allclose(out_big, ref_big, atol=2e-3, rtol=2e-2)

    # bf16 x/W1 path (f32 accumulation) -- looser tolerance vs f32 reference.
    out_bf16 = jax.block_until_ready(
        net_cifar_msa_forward(x_big, params, block_b=8, use_bf16=True)
    )
    assert jnp.allclose(out_bf16, ref_big, atol=5e-2, rtol=5e-2)

    print("KERNEL_OK")
</pallas_src>

<mosaic_0001>
module attributes {stable_mosaic.version = 11 : i64} {
  func.func @mlp_kernel(%arg0: i32, %arg1: memref<8x1024xf32, #tpu.memory_space<vmem>>, %arg2: memref<1024x128xf32, #tpu.memory_space<vmem>>, %arg3: memref<1x128xf32, #tpu.memory_space<vmem>>, %arg4: memref<128x128xf32, #tpu.memory_space<vmem>>, %arg5: memref<1x128xf32, #tpu.memory_space<vmem>>, %arg6: memref<128x10xf32, #tpu.memory_space<vmem>>, %arg7: memref<1x10xf32, #tpu.memory_space<vmem>>, %arg8: memref<8x10xf32, #tpu.memory_space<vmem>>) attributes {dimension_semantics = [#tpu.dimension_semantics<parallel>], iteration_bounds = array<i64: 1>, scalar_prefetch = 0 : i64, scratch_operands = 0 : i64, tpu.core_type = #tpu.core_type<tc>, window_params = [{transform_indices = @transform_0, window_bounds = array<i64: 8, 1024>}, {pipeline_mode = #tpu.pipeline_mode<synchronous>, transform_indices = @transform_1, window_bounds = array<i64: 1024, 128>}, {pipeline_mode = #tpu.pipeline_mode<synchronous>, transform_indices = @transform_2, window_bounds = array<i64: 1, 128>}, {pipeline_mode = #tpu.pipeline_mode<synchronous>, transform_indices = @transform_3, window_bounds = array<i64: 128, 128>}, {pipeline_mode = #tpu.pipeline_mode<synchronous>, transform_indices = @transform_4, window_bounds = array<i64: 1, 128>}, {pipeline_mode = #tpu.pipeline_mode<synchronous>, transform_indices = @transform_5, window_bounds = array<i64: 128, 10>}, {pipeline_mode = #tpu.pipeline_mode<synchronous>, transform_indices = @transform_6, window_bounds = array<i64: 1, 10>}, {transform_indices = @transform_7, window_bounds = array<i64: 8, 10>}]} {
    %c0 = arith.constant 0 : index
    %c0_0 = arith.constant 0 : index
    %0 = vector.load %arg1[%c0, %c0_0] : memref<8x1024xf32, #tpu.memory_space<vmem>>, vector<8x1024xf32>
    %c0_1 = arith.constant 0 : index
    %c0_2 = arith.constant 0 : index
    %1 = vector.load %arg2[%c0_1, %c0_2] : memref<1024x128xf32, #tpu.memory_space<vmem>>, vector<1024x128xf32>
    %cst = arith.constant dense<0.000000e+00> : vector<8x128xf32>
    %2 = tpu.matmul %0, %1, %cst {dimension_numbers = #tpu.dot_dimension_numbers<[1], [0], [0], [1], [0, 0, 1, 1], [], []>} : vector<8x1024xf32>, vector<1024x128xf32>, vector<8x128xf32> -> vector<8x128xf32>
    %c0_3 = arith.constant 0 : index
    %c0_4 = arith.constant 0 : index
    %3 = vector.load %arg3[%c0_3, %c0_4] : memref<1x128xf32, #tpu.memory_space<vmem>>, vector<1x128xf32>
    %4 = vector.broadcast %3 : vector<1x128xf32> to vector<8x128xf32>
    %5 = arith.addf %2, %4 : vector<8x128xf32>
    %cst_5 = arith.constant 0.000000e+00 : f32
    %6 = vector.broadcast %cst_5 : f32 to vector<8x128xf32>
    %7 = arith.maximumf %5, %6 : vector<8x128xf32>
    %c0_6 = arith.constant 0 : index
    %c0_7 = arith.constant 0 : index
    %8 = vector.load %arg4[%c0_6, %c0_7] : memref<128x128xf32, #tpu.memory_space<vmem>>, vector<128x128xf32>
    %cst_8 = arith.constant dense<0.000000e+00> : vector<8x128xf32>
    %9 = tpu.matmul %7, %8, %cst_8 {dimension_numbers = #tpu.dot_dimension_numbers<[1], [0], [0], [1], [0, 0, 1, 1], [], []>} : vector<8x128xf32>, vector<128x128xf32>, vector<8x128xf32> -> vector<8x128xf32>
    %c0_9 = arith.constant 0 : index
    %c0_10 = arith.constant 0 : index
    %10 = vector.load %arg5[%c0_9, %c0_10] : memref<1x128xf32, #tpu.memory_space<vmem>>, vector<1x128xf32>
    %11 = vector.broadcast %10 : vector<1x128xf32> to vector<8x128xf32>
    %12 = arith.addf %9, %11 : vector<8x128xf32>
    %cst_11 = arith.constant 0.000000e+00 : f32
    %13 = vector.broadcast %cst_11 : f32 to vector<8x128xf32>
    %14 = arith.maximumf %12, %13 : vector<8x128xf32>
    %15 = math.tanh %14 : vector<8x128xf32>
    %c0_12 = arith.constant 0 : index
    %c0_13 = arith.constant 0 : index
    %16 = vector.load %arg6[%c0_12, %c0_13] : memref<128x10xf32, #tpu.memory_space<vmem>>, vector<128x10xf32>
    %cst_14 = arith.constant dense<0.000000e+00> : vector<8x10xf32>
    %17 = tpu.matmul %15, %16, %cst_14 {dimension_numbers = #tpu.dot_dimension_numbers<[1], [0], [0], [1], [0, 0, 1, 1], [], []>} : vector<8x128xf32>, vector<128x10xf32>, vector<8x10xf32> -> vector<8x10xf32>
    %c0_15 = arith.constant 0 : index
    %c0_16 = arith.constant 0 : index
    %18 = vector.load %arg7[%c0_15, %c0_16] : memref<1x10xf32, #tpu.memory_space<vmem>>, vector<1x10xf32>
    %19 = vector.broadcast %18 : vector<1x10xf32> to vector<8x10xf32>
    %20 = arith.addf %17, %19 : vector<8x10xf32>
    %cst_17 = arith.constant dense<0xFF800000> : vector<8xf32>
    %21 = vector.multi_reduction <maximumf>, %20, %cst_17 [1] : vector<8x10xf32> to vector<8xf32>
    %22 = vector.shape_cast %21 : vector<8xf32> to vector<8x1xf32>
    %23 = vector.broadcast %22 : vector<8x1xf32> to vector<8x10xf32>
    %24 = arith.subf %20, %23 : vector<8x10xf32>
    %25 = math.exp %24 : vector<8x10xf32>
    %cst_18 = arith.constant dense<0.000000e+00> : vector<8xf32>
    %26 = vector.multi_reduction <add>, %25, %cst_18 [1] : vector<8x10xf32> to vector<8xf32>
    %27 = vector.shape_cast %26 : vector<8xf32> to vector<8x1xf32>
    %28 = tpu.reciprocal %27 {approx = true} : vector<8x1xf32> -> vector<8x1xf32>
    %29 = vector.broadcast %28 : vector<8x1xf32> to vector<8x10xf32>
    %30 = arith.mulf %25, %29 : vector<8x10xf32>
    %c0_19 = arith.constant 0 : index
    %c0_20 = arith.constant 0 : index
    %31 = vector.load %arg8[%c0_19, %c0_20] : memref<8x10xf32, #tpu.memory_space<vmem>>, vector<8x10xf32>
    tpu.vector_store %arg8[%c0_19, %c0_20], %30 {strides = array<i32>} : memref<8x10xf32, #tpu.memory_space<vmem>>, vector<8x10xf32>,
    return
  }
  func.func @transform_0(%arg0: i32) -> (i32, i32) {
    %c0_i32 = arith.constant 0 : i32
    %c0_i32_0 = arith.constant 0 : i32
    return %arg0, %c0_i32 : i32, i32
  }
  func.func @transform_1(%arg0: i32) -> (i32, i32) {
    %c0_i32 = arith.constant 0 : i32
    %c0_i32_0 = arith.constant 0 : i32
    %c0_i32_1 = arith.constant 0 : i32
    return %c0_i32, %c0_i32_0 : i32, i32
  }
  func.func @transform_2(%arg0: i32) -> (i32, i32) {
    %c0_i32 = arith.constant 0 : i32
    %c0_i32_0 = arith.constant 0 : i32
    %c0_i32_1 = arith.constant 0 : i32
    return %c0_i32, %c0_i32_0 : i32, i32
  }
  func.func @transform_3(%arg0: i32) -> (i32, i32) {
    %c0_i32 = arith.constant 0 : i32
    %c0_i32_0 = arith.constant 0 : i32
    %c0_i32_1 = arith.constant 0 : i32
    return %c0_i32, %c0_i32_0 : i32, i32
  }
  func.func @transform_4(%arg0: i32) -> (i32, i32) {
    %c0_i32 = arith.constant 0 : i32
    %c0_i32_0 = arith.constant 0 : i32
    %c0_i32_1 = arith.constant 0 : i32
    return %c0_i32, %c0_i32_0 : i32, i32
  }
  func.func @transform_5(%arg0: i32) -> (i32, i32) {
    %c0_i32 = arith.constant 0 : i32
    %c0_i32_0 = arith.constant 0 : i32
    %c0_i32_1 = arith.constant 0 : i32
    return %c0_i32, %c0_i32_0 : i32, i32
  }
  func.func @transform_6(%arg0: i32) -> (i32, i32) {
    %c0_i32 = arith.constant 0 : i32
    %c0_i32_0 = arith.constant 0 : i32
    %c0_i32_1 = arith.constant 0 : i32
    return %c0_i32, %c0_i32_0 : i32, i32
  }
  func.func @transform_7(%arg0: i32) -> (i32, i32) {
    %c0_i32 = arith.constant 0 : i32
    %c0_i32_0 = arith.constant 0 : i32
    return %arg0, %c0_i32 : i32, i32
  }
}

</mosaic_0001>

<llo_original>
// kernel: tpu_custom_call.1
$region0: #{tpu_custom_call.1}
  #allocation0 [shape = 'u32[]', space=smem, size = 0x4, offset = 0x4, fixed_abs, tag = 'smem constant byte address 0x4 - core index']
  #allocation1 [shape = 'u32[72,128]{1,0:T(1,128)}', space=vmem, size = 0x9000, scoped, tag = 'internal scratch']
  %s0 = inlined_call_operand.hbm [shape: f32[8,1024], index: 0, kind: input, shape index: {}]
  %s1 = inlined_call_operand.hbm [shape: f32[1024,128], index: 1, kind: input, shape index: {}]
  %s2 = inlined_call_operand.vmem [shape: f32[1,128], index: 2, kind: input, shape index: {}]
  %s3 = inlined_call_operand.vmem [shape: f32[128,128], index: 3, kind: input, shape index: {}]
  %s4 = inlined_call_operand.vmem [shape: f32[1,128], index: 4, kind: input, shape index: {}]
  %s5 = inlined_call_operand.vmem [shape: f32[128,10], index: 5, kind: input, shape index: {}]
  %s6 = inlined_call_operand.vmem [shape: f32[1,10], index: 6, kind: input, shape index: {}]
  %s7 = inlined_call_operand.hbm [shape: f32[8,10], index: 7, kind: output, shape index: {}]
  %s8 = sld [smem:[#allocation0]]
  $region46: #{tpu_custom_call.1} parent=0
    _
  %s10 = ssub.s32 1, %s8
  %s11 = scalar_select 0, %s10, %s8
  $region1: #{tpu_custom_call.1} parent=0
    #allocation2 [shape = 'u8[32768]{0}', space=vmem, size = 0x8000, scoped, tag = 'input window, operand 0, single buffered']
    #allocation3 [shape = 's32[1]{0}', space=sflag, size = 0x4, scoped, tag = 'scoped memory for tpu_custom_call.1']
    #allocation4 [shape = 's32[1]{0}', space=sflag, size = 0x4, scoped, tag = 'scoped memory for tpu_custom_call.1']
    #allocation5 [shape = 'u8[524288]{0}', space=vmem, size = 0x80000, scoped, tag = 'input window, operand 1, single buffered']
    #allocation6 [shape = 's32[1]{0}', space=sflag, size = 0x4, scoped, tag = 'scoped memory for tpu_custom_call.1']
    #allocation7 [shape = 'u8[4096]{0}', space=vmem, size = 0x1000, scoped, tag = 'output window, operand 0, single buffered']
    %12 = vsyncpa [#allocation3], 0
    %13 = vsyncpa [#allocation6], 0
    %14 = vsyncpa [#allocation4], 0
    // Predicated region
    $region2: #{tpu_custom_call.1} parent=1 // pred_check
      _
    $region3: #{tpu_custom_call.1} parent=1 // pred_check_branch
      %16 = sbr.rel (0) target = $region5
    $region4: #{tpu_custom_call.1} parent=1 // pred_region
      %18 = vsyncadd [#allocation3], 0
      %s20 = sshll.u32 %s0, 4
      %s21 = int_to_ptr.hbm [resolvable:$true] %s20
      %s22 = sshll.u32 [#allocation2], 4
      %s23 = int_to_ptr.vmem [resolvable:$true] %s22
      %25 = dma.hbm_to_vmem [thread:$0]  %s21, 1024, %s23, [#allocation3]
    $region5: #{tpu_custom_call.1} parent=1 // pred_fallthru
      _
    // Predicated region
    $region6: #{tpu_custom_call.1} parent=1 // pred_check
      _
    $region7: #{tpu_custom_call.1} parent=1 // pred_check_branch
      %27 = sbr.rel (0) target = $region9
    $region8: #{tpu_custom_call.1} parent=1 // pred_region
      %29 = vsyncadd [#allocation6], 0
      %s30 = sshll.u32 %s1, 4
      %s31 = int_to_ptr.hbm [resolvable:$true] %s30
      %s32 = sshll.u32 [#allocation5], 4
      %s33 = int_to_ptr.vmem [resolvable:$true] %s32
      %38 = dma.hbm_to_vmem [thread:$0]  %s31, 16384, %s33, [#allocation6], 128, 128, 8
    $region9: #{tpu_custom_call.1} parent=1 // pred_fallthru
      _
    // Predicated region
    $region10: #{tpu_custom_call.1} parent=1 // pred_check
      _
    $region11: #{tpu_custom_call.1} parent=1 // pred_check_branch
      %40 = sbr.rel (0) target = $region13
    $region12: #{tpu_custom_call.1} parent=1 // pred_region
      _
    $region13: #{tpu_custom_call.1} parent=1 // pred_fallthru
      _
    // Predicated region
    $region14: #{tpu_custom_call.1} parent=1 // pred_check
      _
    $region15: #{tpu_custom_call.1} parent=1 // pred_check_branch
      %42 = sbr.rel (0) target = $region17
    $region16: #{tpu_custom_call.1} parent=1 // pred_region
      _
    $region17: #{tpu_custom_call.1} parent=1 // pred_fallthru
      _
    // Predicated region
    $region18: #{tpu_custom_call.1} parent=1 // pred_check
      _
    $region19: #{tpu_custom_call.1} parent=1 // pred_check_branch
      %44 = sbr.rel (0) target = $region21
    $region20: #{tpu_custom_call.1} parent=1 // pred_region
      _
    $region21: #{tpu_custom_call.1} parent=1 // pred_fallthru
      _
    // Predicated region
    $region22: #{tpu_custom_call.1} parent=1 // pred_check
      _
    $region23: #{tpu_custom_call.1} parent=1 // pred_check_branch
      %46 = sbr.rel (0) target = $region25
    $region24: #{tpu_custom_call.1} parent=1 // pred_region
      _
    $region25: #{tpu_custom_call.1} parent=1 // pred_fallthru
      _
    // Predicated region
    $region26: #{tpu_custom_call.1} parent=1 // pred_check
      _
    $region27: #{tpu_custom_call.1} parent=1 // pred_check_branch
      %48 = sbr.rel (0) target = $region29
    $region28: #{tpu_custom_call.1} parent=1 // pred_region
      _
    $region29: #{tpu_custom_call.1} parent=1 // pred_fallthru
      _
    // Predicated region
    $region30: #{tpu_custom_call.1} parent=1 // pred_check
      _
    $region31: #{tpu_custom_call.1} parent=1 // pred_check_branch
      %50 = sbr.rel (0) target = $region33
    $region32: #{tpu_custom_call.1} parent=1 // pred_region
      %52 = dma.done [#allocation3], 1024
    $region33: #{tpu_custom_call.1} parent=1 // pred_fallthru
      _
    // Predicated region
    $region34: #{tpu_custom_call.1} parent=1 // pred_check
      _
    $region35: #{tpu_custom_call.1} parent=1 // pred_check_branch
      %54 = sbr.rel (0) target = $region37
    $region36: #{tpu_custom_call.1} parent=1 // pred_region
      %56 = dma.done [#allocation6], 16384
    $region37: #{tpu_custom_call.1} parent=1 // pred_fallthru
      _
    %v57 = vld [vmem:[#allocation2] sm:$0xff]
    %v58 = vld [vmem:[#allocation2 + $0x8] sm:$0xff]
    %v59 = vld [vmem:[#allocation2 + $0x10] sm:$0xff]
    %v60 = vld [vmem:[#allocation2 + $0x18] sm:$0xff]
    %v61 = vld [vmem:[#allocation2 + $0x20] sm:$0xff]
    %v62 = vld [vmem:[#allocation2 + $0x28] sm:$0xff]
    %v63 = vld [vmem:[#allocation2 + $0x30] sm:$0xff]
    %v64 = vld [vmem:[#allocation2 + $0x38] sm:$0xff]
    %v65 = vld [vmem:[#allocation5] sm:$0xff]
    %v66 = vld [vmem:[#allocation5 + $0x8] sm:$0xff]
    %v67 = vld [vmem:[#allocation5 + $0x10] sm:$0xff]
    %v68 = vld [vmem:[#allocation5 + $0x18] sm:$0xff]
    %v69 = vld [vmem:[#allocation5 + $0x20] sm:$0xff]
    %v70 = vld [vmem:[#allocation5 + $0x28] sm:$0xff]
    %v71 = vld [vmem:[#allocation5 + $0x30] sm:$0xff]
    %v72 = vld [vmem:[#allocation5 + $0x38] sm:$0xff]
    %v73 = vld [vmem:[#allocation5 + $0x40] sm:$0xff]
    %v74 = vld [vmem:[#allocation5 + $0x48] sm:$0xff]
    %v75 = vld [vmem:[#allocation5 + $0x50] sm:$0xff]
    %v76 = vld [vmem:[#allocation5 + $0x58] sm:$0xff]
    %v77 = vld [vmem:[#allocation5 + $0x60] sm:$0xff]
    %v78 = vld [vmem:[#allocation5 + $0x68] sm:$0xff]
    %v79 = vld [vmem:[#allocation5 + $0x70] sm:$0xff]
    %v80 = vld [vmem:[#allocation5 + $0x78] sm:$0xff]
    %v81 = vld [vmem:[#allocation5 + $0x80] sm:$0xff]
    %v82 = vld [vmem:[#allocation5 + $0x88] sm:$0xff]
    %v83 = vld [vmem:[#allocation5 + $0x90] sm:$0xff]
    %v84 = vld [vmem:[#allocation5 + $0x98] sm:$0xff]
    %v85 = vld [vmem:[#allocation5 + $0xa0] sm:$0xff]
    %v86 = vld [vmem:[#allocation5 + $0xa8] sm:$0xff]
    %v87 = vld [vmem:[#allocation5 + $0xb0] sm:$0xff]
    %v88 = vld [vmem:[#allocation5 + $0xb8] sm:$0xff]
    %v89 = vld [vmem:[#allocation5 + $0xc0] sm:$0xff]
    %v90 = vld [vmem:[#allocation5 + $0xc8] sm:$0xff]
    %v91 = vld [vmem:[#allocation5 + $0xd0] sm:$0xff]
    %v92 = vld [vmem:[#allocation5 + $0xd8] sm:$0xff]
    %v93 = vld [vmem:[#allocation5 + $0xe0] sm:$0xff]
    %v94 = vld [vmem:[#allocation5 + $0xe8] sm:$0xff]
    %v95 = vld [vmem:[#allocation5 + $0xf0] sm:$0xff]
    %v96 = vld [vmem:[#allocation5 + $0xf8] sm:$0xff]
    %v97 = vld [vmem:[#allocation5 + $0x100] sm:$0xff]
    %v98 = vld [vmem:[#allocation5 + $0x108] sm:$0xff]
    %v99 = vld [vmem:[#allocation5 + $0x110] sm:$0xff]
    %v100 = vld [vmem:[#allocation5 + $0x118] sm:$0xff]
    %v101 = vld [vmem:[#allocation5 + $0x120] sm:$0xff]
    %v102 = vld [vmem:[#allocation5 + $0x128] sm:$0xff]
    %v103 = vld [vmem:[#allocation5 + $0x130] sm:$0xff]
    %v104 = vld [vmem:[#allocation5 + $0x138] sm:$0xff]
    %v105 = vld [vmem:[#allocation5 + $0x140] sm:$0xff]
    %v106 = vld [vmem:[#allocation5 + $0x148] sm:$0xff]
    %v107 = vld [vmem:[#allocation5 + $0x150] sm:$0xff]
    %v108 = vld [vmem:[#allocation5 + $0x158] sm:$0xff]
    %v109 = vld [vmem:[#allocation5 + $0x160] sm:$0xff]
    %v110 = vld [vmem:[#allocation5 + $0x168] sm:$0xff]
    %v111 = vld [vmem:[#allocation5 + $0x170] sm:$0xff]
    %v112 = vld [vmem:[#allocation5 + $0x178] sm:$0xff]
    %v113 = vld [vmem:[#allocation5 + $0x180] sm:$0xff]
    %v114 = vld [vmem:[#allocation5 + $0x188] sm:$0xff]
    %v115 = vld [vmem:[#allocation5 + $0x190] sm:$0xff]
    %v116 = vld [vmem:[#allocation5 + $0x198] sm:$0xff]
    %v117 = vld [vmem:[#allocation5 + $0x1a0] sm:$0xff]
    %v118 = vld [vmem:[#allocation5 + $0x1a8] sm:$0xff]
    %v119 = vld [vmem:[#allocation5 + $0x1b0] sm:$0xff]
    %v120 = vld [vmem:[#allocation5 + $0x1b8] sm:$0xff]
    %v121 = vld [vmem:[#allocation5 + $0x1c0] sm:$0xff]
    %v122 = vld [vmem:[#allocation5 + $0x1c8] sm:$0xff]
    %v123 = vld [vmem:[#allocation5 + $0x1d0] sm:$0xff]
    %v124 = vld [vmem:[#allocation5 + $0x1d8] sm:$0xff]
    %v125 = vld [vmem:[#allocation5 + $0x1e0] sm:$0xff]
    %v126 = vld [vmem:[#allocation5 + $0x1e8] sm:$0xff]
    %v127 = vld [vmem:[#allocation5 + $0x1f0] sm:$0xff]
    %v128 = vld [vmem:[#allocation5 + $0x1f8] sm:$0xff]
    %v129 = vld [vmem:[#allocation5 + $0x200] sm:$0xff]
    %v130 = vld [vmem:[#allocation5 + $0x208] sm:$0xff]
    %v131 = vld [vmem:[#allocation5 + $0x210] sm:$0xff]
    %v132 = vld [vmem:[#allocation5 + $0x218] sm:$0xff]
    %v133 = vld [vmem:[#allocation5 + $0x220] sm:$0xff]
    %v134 = vld [vmem:[#allocation5 + $0x228] sm:$0xff]
    %v135 = vld [vmem:[#allocation5 + $0x230] sm:$0xff]
    %v136 = vld [vmem:[#allocation5 + $0x238] sm:$0xff]
    %v137 = vld [vmem:[#allocation5 + $0x240] sm:$0xff]
    %v138 = vld [vmem:[#allocation5 + $0x248] sm:$0xff]
    %v139 = vld [vmem:[#allocation5 + $0x250] sm:$0xff]
    %v140 = vld [vmem:[#allocation5 + $0x258] sm:$0xff]
    %v141 = vld [vmem:[#allocation5 + $0x260] sm:$0xff]
    %v142 = vld [vmem:[#allocation5 + $0x268] sm:$0xff]
    %v143 = vld [vmem:[#allocation5 + $0x270] sm:$0xff]
    %v144 = vld [vmem:[#allocation5 + $0x278] sm:$0xff]
    %v145 = vld [vmem:[#allocation5 + $0x280] sm:$0xff]
    %v146 = vld [vmem:[#allocation5 + $0x288] sm:$0xff]
    %v147 = vld [vmem:[#allocation5 + $0x290] sm:$0xff]
    %v148 = vld [vmem:[#allocation5 + $0x298] sm:$0xff]
    %v149 = vld [vmem:[#allocation5 + $0x2a0] sm:$0xff]
    %v150 = vld [vmem:[#allocation5 + $0x2a8] sm:$0xff]
    %v151 = vld [vmem:[#allocation5 + $0x2b0] sm:$0xff]
    %v152 = vld [vmem:[#allocation5 + $0x2b8] sm:$0xff]
    %v153 = vld [vmem:[#allocation5 + $0x2c0] sm:$0xff]
    %v154 = vld [vmem:[#allocation5 + $0x2c8] sm:$0xff]
    %v155 = vld [vmem:[#allocation5 + $0x2d0] sm:$0xff]
    %v156 = vld [vmem:[#allocation5 + $0x2d8] sm:$0xff]
    %v157 = vld [vmem:[#allocation5 + $0x2e0] sm:$0xff]
    %v158 = vld [vmem:[#allocation5 + $0x2e8] sm:$0xff]
    %v159 = vld [vmem:[#allocation5 + $0x2f0] sm:$0xff]
    %v160 = vld [vmem:[#allocation5 + $0x2f8] sm:$0xff]
    %v161 = vld [vmem:[#allocation5 + $0x300] sm:$0xff]
    %v162 = vld [vmem:[#allocation5 + $0x308] sm:$0xff]
    %v163 = vld [vmem:[#allocation5 + $0x310] sm:$0xff]
    %v164 = vld [vmem:[#allocation5 + $0x318] sm:$0xff]
    %v165 = vld [vmem:[#allocation5 + $0x320] sm:$0xff]
    %v166 = vld [vmem:[#allocation5 + $0x328] sm:$0xff]
    %v167 = vld [vmem:[#allocation5 + $0x330] sm:$0xff]
    %v168 = vld [vmem:[#allocation5 + $0x338] sm:$0xff]
    %v169 = vld [vmem:[#allocation5 + $0x340] sm:$0xff]
    %v170 = vld [vmem:[#allocation5 + $0x348] sm:$0xff]
    %v171 = vld [vmem:[#allocation5 + $0x350] sm:$0xff]
    %v172 = vld [vmem:[#allocation5 + $0x358] sm:$0xff]
    %v173 = vld [vmem:[#allocation5 + $0x360] sm:$0xff]
    %v174 = vld [vmem:[#allocation5 + $0x368] sm:$0xff]
    %v175 = vld [vmem:[#allocation5 + $0x370] sm:$0xff]
    %v176 = vld [vmem:[#allocation5 + $0x378] sm:$0xff]
    %v177 = vld [vmem:[#allocation5 + $0x380] sm:$0xff]
    %v178 = vld [vmem:[#allocation5 + $0x388] sm:$0xff]
    %v179 = vld [vmem:[#allocation5 + $0x390] sm:$0xff]
    %v180 = vld [vmem:[#allocation5 + $0x398] sm:$0xff]
    %v181 = vld [vmem:[#allocation5 + $0x3a0] sm:$0xff]
    %v182 = vld [vmem:[#allocation5 + $0x3a8] sm:$0xff]
    %v183 = vld [vmem:[#allocation5 + $0x3b0] sm:$0xff]
    %v184 = vld [vmem:[#allocation5 + $0x3b8] sm:$0xff]
    %v185 = vld [vmem:[#allocation5 + $0x3c0] sm:$0xff]
    %v186 = vld [vmem:[#allocation5 + $0x3c8] sm:$0xff]
    %v187 = vld [vmem:[#allocation5 + $0x3d0] sm:$0xff]
    %v188 = vld [vmem:[#allocation5 + $0x3d8] sm:$0xff]
    %v189 = vld [vmem:[#allocation5 + $0x3e0] sm:$0xff]
    %v190 = vld [vmem:[#allocation5 + $0x3e8] sm:$0xff]
    %v191 = vld [vmem:[#allocation5 + $0x3f0] sm:$0xff]
    %v192 = vld [vmem:[#allocation5 + $0x3f8] sm:$0xff]
    %v193 = vld [vmem:[%s2] sm:$0x1]
    %v195 = vperm.slane %v193, 0
    %197 = vmatpush.msra.mxu0 %v80
    %198 = vmatpush.msra.mxu0 %v79
    %199 = vmatpush.msra.mxu0 %v78
    %200 = vmatpush.msra.mxu0 %v77
    %201 = vmatpush.msra.mxu0 %v76
    %202 = vmatpush.msra.mxu0 %v75
    %203 = vmatpush.msra.mxu0 %v74
    %204 = vmatpush.msra.mxu0 %v73
    %205 = vmatpush.msra.mxu0 %v72
    %206 = vmatpush.msra.mxu0 %v71
    %207 = vmatpush.msra.mxu0 %v70
    %208 = vmatpush.msra.mxu0 %v69
    %209 = vmatpush.msra.mxu0 %v68
    %210 = vmatpush.msra.mxu0 %v67
    %211 = vmatpush.msra.mxu0 %v66
    %212 = vmatpush.msra.mxu0 %v65
    %213 = vmatmul.f32.gmra.mxu0 %v57
    %v214 = vpop.f32.mrf.mxu0
    %v215 = vadd.f32 %v195, %v214
    %216 = vdwg.mxu0
    %217 = vmatpush.msra.mxu0 %v96
    %218 = vmatpush.msra.mxu0 %v95
    %219 = vmatpush.msra.mxu0 %v94
    %220 = vmatpush.msra.mxu0 %v93
    %221 = vmatpush.msra.mxu0 %v92
    %222 = vmatpush.msra.mxu0 %v91
    %223 = vmatpush.msra.mxu0 %v90
    %224 = vmatpush.msra.mxu0 %v89
    %225 = vmatpush.msra.mxu0 %v88
    %226 = vmatpush.msra.mxu0 %v87
    %227 = vmatpush.msra.mxu0 %v86
    %228 = vmatpush.msra.mxu0 %v85
    %229 = vmatpush.msra.mxu0 %v84
    %230 = vmatpush.msra.mxu0 %v83
    %231 = vmatpush.msra.mxu0 %v82
    %232 = vmatpush.msra.mxu0 %v81
    %233 = vmatmul.f32.gmra.mxu0 %v58
    %v234 = vpop.f32.mrf.mxu0
    %v235 = vadd.f32 %v215, %v234
    %236 = vdwg.mxu0
    %237 = vmatpush.msra.mxu0 %v112
    %238 = vmatpush.msra.mxu0 %v111
    %239 = vmatpush.msra.mxu0 %v110
    %240 = vmatpush.msra.mxu0 %v109
    %241 = vmatpush.msra.mxu0 %v108
    %242 = vmatpush.msra.mxu0 %v107
    %243 = vmatpush.msra.mxu0 %v106
    %244 = vmatpush.msra.mxu0 %v105
    %245 = vmatpush.msra.mxu0 %v104
    %246 = vmatpush.msra.mxu0 %v103
    %247 = vmatpush.msra.mxu0 %v102
    %248 = vmatpush.msra.mxu0 %v101
    %249 = vmatpush.msra.mxu0 %v100
    %250 = vmatpush.msra.mxu0 %v99
    %251 = vmatpush.msra.mxu0 %v98
    %252 = vmatpush.msra.mxu0 %v97
    %253 = vmatmul.f32.gmra.mxu0 %v59
    %v254 = vpop.f32.mrf.mxu0
    %v255 = vadd.f32 %v235, %v254
    %256 = vdwg.mxu0
    %257 = vmatpush.msra.mxu0 %v128
    %258 = vmatpush.msra.mxu0 %v127
    %259 = vmatpush.msra.mxu0 %v126
    %260 = vmatpush.msra.mxu0 %v125
    %261 = vmatpush.msra.mxu0 %v124
    %262 = vmatpush.msra.mxu0 %v123
    %263 = vmatpush.msra.mxu0 %v122
    %264 = vmatpush.msra.mxu0 %v121
    %265 = vmatpush.msra.mxu0 %v120
    %266 = vmatpush.msra.mxu0 %v119
    %267 = vmatpush.msra.mxu0 %v118
    %268 = vmatpush.msra.mxu0 %v117
    %269 = vmatpush.msra.mxu0 %v116
    %270 = vmatpush.msra.mxu0 %v115
    %271 = vmatpush.msra.mxu0 %v114
    %272 = vmatpush.msra.mxu0 %v113
    %273 = vmatmul.f32.gmra.mxu0 %v60
    %v274 = vpop.f32.mrf.mxu0
    %v275 = vadd.f32 %v255, %v274
    %276 = vdwg.mxu0
    %277 = vmatpush.msra.mxu0 %v144
    %278 = vmatpush.msra.mxu0 %v143
    %279 = vmatpush.msra.mxu0 %v142
    %280 = vmatpush.msra.mxu0 %v141
    %281 = vmatpush.msra.mxu0 %v140
    %282 = vmatpush.msra.mxu0 %v139
    %283 = vmatpush.msra.mxu0 %v138
    %284 = vmatpush.msra.mxu0 %v137
    %285 = vmatpush.msra.mxu0 %v136
    %286 = vmatpush.msra.mxu0 %v135
    %287 = vmatpush.msra.mxu0 %v134
    %288 = vmatpush.msra.mxu0 %v133
    %289 = vmatpush.msra.mxu0 %v132
    %290 = vmatpush.msra.mxu0 %v131
    %291 = vmatpush.msra.mxu0 %v130
    %292 = vmatpush.msra.mxu0 %v129
    %293 = vmatmul.f32.gmra.mxu0 %v61
    %v294 = vpop.f32.mrf.mxu0
    %v295 = vadd.f32 %v275, %v294
    %296 = vdwg.mxu0
    %297 = vmatpush.msra.mxu0 %v160
    %298 = vmatpush.msra.mxu0 %v159
    %299 = vmatpush.msra.mxu0 %v158
    %300 = vmatpush.msra.mxu0 %v157
    %301 = vmatpush.msra.mxu0 %v156
    %302 = vmatpush.msra.mxu0 %v155
    %303 = vmatpush.msra.mxu0 %v154
    %304 = vmatpush.msra.mxu0 %v153
    %305 = vmatpush.msra.mxu0 %v152
    %306 = vmatpush.msra.mxu0 %v151
    %307 = vmatpush.msra.mxu0 %v150
    %308 = vmatpush.msra.mxu0 %v149
    %309 = vmatpush.msra.mxu0 %v148
    %310 = vmatpush.msra.mxu0 %v147
    %311 = vmatpush.msra.mxu0 %v146
    %312 = vmatpush.msra.mxu0 %v145
    %313 = vmatmul.f32.gmra.mxu0 %v62
    %v314 = vpop.f32.mrf.mxu0
    %v315 = vadd.f32 %v295, %v314
    %316 = vdwg.mxu0
    %317 = vmatpush.msra.mxu0 %v176
    %318 = vmatpush.msra.mxu0 %v175
    %319 = vmatpush.msra.mxu0 %v174
    %320 = vmatpush.msra.mxu0 %v173
    %321 = vmatpush.msra.mxu0 %v172
    %322 = vmatpush.msra.mxu0 %v171
    %323 = vmatpush.msra.mxu0 %v170
    %324 = vmatpush.msra.mxu0 %v169
    %325 = vmatpush.msra.mxu0 %v168
    %326 = vmatpush.msra.mxu0 %v167
    %327 = vmatpush.msra.mxu0 %v166
    %328 = vmatpush.msra.mxu0 %v165
    %329 = vmatpush.msra.mxu0 %v164
    %330 = vmatpush.msra.mxu0 %v163
    %331 = vmatpush.msra.mxu0 %v162
    %332 = vmatpush.msra.mxu0 %v161
    %333 = vmatmul.f32.gmra.mxu0 %v63
    %v334 = vpop.f32.mrf.mxu0
    %v335 = vadd.f32 %v315, %v334
    %336 = vdwg.mxu0
    %337 = vmatpush.msra.mxu0 %v192
    %338 = vmatpush.msra.mxu0 %v191
    %339 = vmatpush.msra.mxu0 %v190
    %340 = vmatpush.msra.mxu0 %v189
    %341 = vmatpush.msra.mxu0 %v188
    %342 = vmatpush.msra.mxu0 %v187
    %343 = vmatpush.msra.mxu0 %v186
    %344 = vmatpush.msra.mxu0 %v185
    %345 = vmatpush.msra.mxu0 %v184
    %346 = vmatpush.msra.mxu0 %v183
    %347 = vmatpush.msra.mxu0 %v182
    %348 = vmatpush.msra.mxu0 %v181
    %349 = vmatpush.msra.mxu0 %v180
    %350 = vmatpush.msra.mxu0 %v179
    %351 = vmatpush.msra.mxu0 %v178
    %352 = vmatpush.msra.mxu0 %v177
    %353 = vmatmul.f32.gmra.mxu0 %v64
    %v354 = vpop.f32.mrf.mxu0
    %v355 = vadd.f32 %v335, %v354
    %356 = vdwg.mxu0
    %v357 = vmax.f32 %v355, 0.0
    %v358 = vld [vmem:[%s3] sm:$0xff]
    %v359 = vld [vmem:[%s3 + $0x8] sm:$0xff]
    %v360 = vld [vmem:[%s3 + $0x10] sm:$0xff]
    %v361 = vld [vmem:[%s3 + $0x18] sm:$0xff]
    %v362 = vld [vmem:[%s3 + $0x20] sm:$0xff]
    %v363 = vld [vmem:[%s3 + $0x28] sm:$0xff]
    %v364 = vld [vmem:[%s3 + $0x30] sm:$0xff]
    %v365 = vld [vmem:[%s3 + $0x38] sm:$0xff]
    %v366 = vld [vmem:[%s3 + $0x40] sm:$0xff]
    %v367 = vld [vmem:[%s3 + $0x48] sm:$0xff]
    %v368 = vld [vmem:[%s3 + $0x50] sm:$0xff]
    %v369 = vld [vmem:[%s3 + $0x58] sm:$0xff]
    %v370 = vld [vmem:[%s3 + $0x60] sm:$0xff]
    %v371 = vld [vmem:[%s3 + $0x68] sm:$0xff]
    %v372 = vld [vmem:[%s3 + $0x70] sm:$0xff]
    %v373 = vld [vmem:[%s3 + $0x78] sm:$0xff]
    %v374 = vld [vmem:[%s4] sm:$0x1]
    %v376 = vperm.slane %v374, 0
    %378 = vmatpush.msra.mxu0 %v373
    %379 = vmatpush.msra.mxu0 %v372
    %380 = vmatpush.msra.mxu0 %v371
    %381 = vmatpush.msra.mxu0 %v370
    %382 = vmatpush.msra.mxu0 %v369
    %383 = vmatpush.msra.mxu0 %v368
    %384 = vmatpush.msra.mxu0 %v367
    %385 = vmatpush.msra.mxu0 %v366
    %386 = vmatpush.msra.mxu0 %v365
    %387 = vmatpush.msra.mxu0 %v364
    %388 = vmatpush.msra.mxu0 %v363
    %389 = vmatpush.msra.mxu0 %v362
    %390 = vmatpush.msra.mxu0 %v361
    %391 = vmatpush.msra.mxu0 %v360
    %392 = vmatpush.msra.mxu0 %v359
    %393 = vmatpush.msra.mxu0 %v358
    %394 = vmatmul.f32.gmra.mxu0 %v357
    %v395 = vpop.f32.mrf.mxu0
    %v396 = vadd.f32 %v376, %v395
    %397 = vdwg.mxu0
    %v398 = vmax.f32 %v396, 0.0
    %v399 = vtanh.pop %v398
    %v400 = vld [vmem:[%s5] sm:$0xff]
    %v401 = vld [vmem:[%s5 + $0x8] sm:$0xff]
    %v402 = vld [vmem:[%s5 + $0x10] sm:$0xff]
    %v403 = vld [vmem:[%s5 + $0x18] sm:$0xff]
    %v404 = vld [vmem:[%s5 + $0x20] sm:$0xff]
    %v405 = vld [vmem:[%s5 + $0x28] sm:$0xff]
    %v406 = vld [vmem:[%s5 + $0x30] sm:$0xff]
    %v407 = vld [vmem:[%s5 + $0x38] sm:$0xff]
    %v408 = vld [vmem:[%s5 + $0x40] sm:$0xff]
    %v409 = vld [vmem:[%s5 + $0x48] sm:$0xff]
    %v410 = vld [vmem:[%s5 + $0x50] sm:$0xff]
    %v411 = vld [vmem:[%s5 + $0x58] sm:$0xff]
    %v412 = vld [vmem:[%s5 + $0x60] sm:$0xff]
    %v413 = vld [vmem:[%s5 + $0x68] sm:$0xff]
    %v414 = vld [vmem:[%s5 + $0x70] sm:$0xff]
    %v415 = vld [vmem:[%s5 + $0x78] sm:$0xff]
    %v416 = vld [vmem:[%s6] sm:$0x1]
    %v418 = vperm.slane %v416, 0
    %420 = vmatpush.msra.mxu0 %v415
    %421 = vmatpush.msra.mxu0 %v414
    %422 = vmatpush.msra.mxu0 %v413
    %423 = vmatpush.msra.mxu0 %v412
    %424 = vmatpush.msra.mxu0 %v411
    %425 = vmatpush.msra.mxu0 %v410
    %426 = vmatpush.msra.mxu0 %v409
    %427 = vmatpush.msra.mxu0 %v408
    %428 = vmatpush.msra.mxu0 %v407
    %429 = vmatpush.msra.mxu0 %v406
    %430 = vmatpush.msra.mxu0 %v405
    %431 = vmatpush.msra.mxu0 %v404
    %432 = vmatpush.msra.mxu0 %v403
    %433 = vmatpush.msra.mxu0 %v402
    %434 = vmatpush.msra.mxu0 %v401
    %435 = vmatpush.msra.mxu0 %v400
    %436 = vmatmul.f32.gmra.mxu0 %v399
    %v437 = vpop.f32.mrf.mxu0
    %v438 = vadd.f32 %v418, %v437
    %439 = vdwg.mxu0
    %vm440 = vcmask 80896
    %v441 = vsel %vm440, %v438, -inf
    %442 = vmax.xlane.f32.xlu0 %v441
    %v443 = vpop.xlane.xlu0 %442
    %v444 = vsub.f32 %v438, %v443
    %v445 = vmul.f32 %v444, 1.442695
    %v446 = vpow.pop %v445
    %v447 = vsel %vm440, %v446, 0.0
    %448 = vadd.xlane.f32.xlu0 %v447
    %v449 = vpop.xlane.xlu0 %448
    %v450 = vrcp.pop %v449
    %v451 = vmul.f32 %v446, %v450
    %452 = vst.msk [vmem:[#allocation7] sm:$0xff] %vm440, %v451
    // Predicated region
    $region38: #{tpu_custom_call.1} parent=1 // pred_check
      _
    $region39: #{tpu_custom_call.1} parent=1 // pred_check_branch
      %454 = sbr.rel (0) target = $region41
    $region40: #{tpu_custom_call.1} parent=1 // pred_region
      %456 = vsyncadd [#allocation4], 0
      %s458 = sshll.u32 [#allocation7], 4
      %s459 = int_to_ptr.vmem [resolvable:$true] %s458
      %s460 = sshll.u32 %s7, 4
      %s461 = int_to_ptr.hbm [resolvable:$true] %s460
      %463 = dma.vmem_to_hbm [thread:$0]  %s459, 128, %s461, [#allocation4]
    $region41: #{tpu_custom_call.1} parent=1 // pred_fallthru
      _
    // Predicated region
    $region42: #{tpu_custom_call.1} parent=1 // pred_check
      _
    $region43: #{tpu_custom_call.1} parent=1 // pred_check_branch
      %465 = sbr.rel (0) target = $region45
    $region44: #{tpu_custom_call.1} parent=1 // pred_region
      %467 = dma.done [#allocation4], 128
    $region45: #{tpu_custom_call.1} parent=1 // pred_fallthru
      _
    %468 = vsyncpa [#allocation3], 1
    %469 = vsyncpa [#allocation6], 1
    %470 = vsyncpa [#allocation4], 1

</llo_original>
